<compile_context>
chip_gen: v7x
topology: tpu7x:2x2x1
jax: 0.10.0
libtpu: 0.0.40
codegen_flags: <defaults>
</compile_context>

<pallas_src>
import math
from functools import partial

import jax
import jax.numpy as jnp
from jax.experimental import pallas as pl
from jax.experimental.pallas import tpu as pltpu

LANE = 128
SUBLANE = 8


def _round_up(x, m):
    return (x + m - 1) // m * m


def _leaky_relu(v, negative_slope=0.01):
    # Matches torch.nn.functional.leaky_relu default slope.
    return jnp.where(v > 0, v, negative_slope * v)


def dqn_kernel(x_ref,
               w1_ref, b1_ref,
               w2_ref, b2_ref,
               w3_ref, b3_ref,
               w4_ref, b4_ref,
               o_ref):
    # MXU feed dtype comes from the packed weights (bf16 or f32); accumulate in
    # f32 via preferred_element_type; epilogue (bias + leaky_relu) stays f32.
    cdt = w1_ref.dtype
    x = x_ref[...].astype(cdt)

    h = jnp.dot(x, w1_ref[...], preferred_element_type=jnp.float32) + b1_ref[...]
    h = _leaky_relu(h)

    h = jnp.dot(h.astype(cdt), w2_ref[...],
                preferred_element_type=jnp.float32) + b2_ref[...]
    h = _leaky_relu(h)

    h = jnp.dot(h.astype(cdt), w3_ref[...],
                preferred_element_type=jnp.float32) + b3_ref[...]
    h = _leaky_relu(h)

    out = jnp.dot(h.astype(cdt), w4_ref[...],
                  preferred_element_type=jnp.float32) + b4_ref[...]
    o_ref[...] = out.astype(o_ref.dtype)


def _pad2d(a, rows, cols):
    return jnp.pad(a, ((0, rows - a.shape[0]), (0, cols - a.shape[1])))


def pack_dqn_params(params, *, use_bf16=True):
    """Pad output feature dims to lane-dense multiples of 128 and cast weights
    for the MXU.  Call ONCE (at init / after each optimizer step), not per
    forward.  Padded weight columns and bias entries are exactly zero, so the
    padded lanes stay zero through the whole network."""
    (w1, b1), (w2, b2), (w3, b3), (w4, b4) = params
    n_obs = w1.shape[0]
    h1 = _round_up(w1.shape[1], LANE)
    h2 = _round_up(w2.shape[1], LANE)
    h3 = _round_up(w3.shape[1], LANE)
    d_out = _round_up(w4.shape[1], LANE)

    wdt = jnp.bfloat16 if use_bf16 else jnp.float32
    return (
        _pad2d(w1, n_obs, h1).astype(wdt),   # K stays un-padded (= n_obs)
        _pad2d(b1, 1, h1),                   # biases stay f32
        _pad2d(w2, h1, h2).astype(wdt),
        _pad2d(b2, 1, h2),
        _pad2d(w3, h2, h3).astype(wdt),
        _pad2d(b3, 1, h3),
        _pad2d(w4, h3, d_out).astype(wdt),
        _pad2d(b4, 1, d_out),
    )


@partial(jax.jit, static_argnames=("n_actions", "block_b", "out_dtype"))
def dqn_forward(x, packed, *, n_actions, block_b=2048, out_dtype=jnp.float32):
    """Fused DQN MLP forward.

    x: [B, n_obs] f32.  packed: output of pack_dqn_params.
    Returns [B, n_actions] in out_dtype (f32 default; bf16 halves output HBM
    traffic and is fine for argmax / TD targets).
    """
    w1p, b1p, w2p, b2p, w3p, b3p, w4p, b4p = packed
    B, n_obs = x.shape
    h1 = b1p.shape[1]
    h2 = b2p.shape[1]
    h3 = b3p.shape[1]
    d_out = b4p.shape[1]

    # --- batch tiling: no batch padding; last block may be partial -----------
    block_b = _round_up(block_b, SUBLANE)
    if B > block_b:
        tb = block_b                              # sublane-aligned big tiles
    elif B >= 2 * SUBLANE:
        # Split small batches into >=2 tiles so both v7x TensorCores get work.
        tb = _round_up(pl.cdiv(B, 2), SUBLANE)
    else:
        tb = B                                    # block == full dim -> legal
    grid = pl.cdiv(B, tb)

    x_map = lambda i: (i, 0)        # x / out stream with the batch grid
    w_map = lambda i: (0, 0)        # weights/biases VMEM-resident across tiles

    wbytes = sum(int(w.size) * w.dtype.itemsize for w in (w1p, w2p, w3p, w4p))
    flops = 2 * B * (n_obs * h1 + h1 * h2 + h2 * h3 + h3 * d_out)
    bytes_accessed = (B * n_obs * x.dtype.itemsize
                      + B * d_out * jnp.dtype(out_dtype).itemsize
                      + wbytes + (h1 + h2 + h3 + d_out) * 4)

    out_padded = pl.pallas_call(
        dqn_kernel,
        out_shape=jax.ShapeDtypeStruct((B, d_out), out_dtype),
        grid=(grid,),
        in_specs=[
            pl.BlockSpec((tb, n_obs), x_map),     # last dim = full dim (16)
            pl.BlockSpec((n_obs, h1), w_map),
            pl.BlockSpec((1, h1), w_map),
            pl.BlockSpec((h1, h2), w_map),
            pl.BlockSpec((1, h2), w_map),
            pl.BlockSpec((h2, h3), w_map),
            pl.BlockSpec((1, h3), w_map),
            pl.BlockSpec((h3, d_out), w_map),
            pl.BlockSpec((1, d_out), w_map),
        ],
        out_specs=pl.BlockSpec((tb, d_out), x_map),
        compiler_params=pltpu.CompilerParams(
            dimension_semantics=("parallel",),
            vmem_limit_bytes=32 * 1024 * 1024),
        cost_estimate=pl.CostEstimate(
            flops=flops, transcendentals=0, bytes_accessed=bytes_accessed),
    )(x, w1p, b1p, w2p, b2p, w3p, b3p, w4p, b4p)

    return out_padded[:, :n_actions]


def init_dqn_params(key, n_observations, n_actions):
    """Deterministic init mimicking nn.Linear's U(-1/sqrt(fan_in), +).
    Weights stored transposed as [in, out]; biases as [1, out]."""
    dims = [(n_observations, 64), (64, 64), (64, 128), (128, n_actions)]
    params = []
    for (fan_in, fan_out) in dims:
        key, kw, kb = jax.random.split(key, 3)
        bound = 1.0 / math.sqrt(fan_in)
        w = jax.random.uniform(kw, (fan_in, fan_out), jnp.float32, -bound, bound)
        b = jax.random.uniform(kb, (1, fan_out), jnp.float32, -bound, bound)
        params.append((w, b))
    return params


def dqn_reference(x, params):
    """Plain-JAX reference for correctness checking."""
    (w1, b1), (w2, b2), (w3, b3), (w4, b4) = params
    h = _leaky_relu(x @ w1 + b1)
    h = _leaky_relu(h @ w2 + b2)
    h = _leaky_relu(h @ w3 + b3)
    return h @ w4 + b4


if __name__ == "__main__":
    # TODO(synk): only the DQN.forward pass is implemented; the gym env,
    # replay buffer and optimizer loop from the original script are out of
    # scope for a Pallas kernel.
    key = jax.random.PRNGKey(0)

    batch = 8
    n_observations = 16
    n_actions = 4     # ALE/Breakout-v5 action space

    key, kx = jax.random.split(key)
    x = jax.random.normal(kx, (batch, n_observations), jnp.float32)
    params = init_dqn_params(key, n_observations, n_actions)

    # Pack once (padding + bf16 cast) outside the per-step forward.
    packed_f32 = pack_dqn_params(params, use_bf16=False)
    packed_bf16 = pack_dqn_params(params, use_bf16=True)

    out_f32 = jax.block_until_ready(
        dqn_forward(x, packed_f32, n_actions=n_actions))
    out_bf16 = jax.block_until_ready(
        dqn_forward(x, packed_bf16, n_actions=n_actions,
                    out_dtype=jnp.bfloat16))

    ref = dqn_reference(x, params)
    assert out_f32.shape == (batch, n_actions), out_f32.shape
    assert out_bf16.shape == (batch, n_actions), out_bf16.shape
    assert jnp.allclose(out_f32, ref, atol=1e-4, rtol=1e-4), "f32 mismatch"
    assert jnp.allclose(out_bf16.astype(jnp.float32), ref,
                        atol=5e-2, rtol=5e-2), "bf16 mismatch"

    print("KERNEL_OK")
</pallas_src>

<mosaic_0001>
module attributes {stable_mosaic.version = 11 : i64} {
  func.func @dqn_kernel(%arg0: i32, %arg1: memref<8x16xf32, #tpu.memory_space<vmem>>, %arg2: memref<16x128xf32, #tpu.memory_space<vmem>>, %arg3: memref<1x128xf32, #tpu.memory_space<vmem>>, %arg4: memref<128x128xf32, #tpu.memory_space<vmem>>, %arg5: memref<1x128xf32, #tpu.memory_space<vmem>>, %arg6: memref<128x128xf32, #tpu.memory_space<vmem>>, %arg7: memref<1x128xf32, #tpu.memory_space<vmem>>, %arg8: memref<128x128xf32, #tpu.memory_space<vmem>>, %arg9: memref<1x128xf32, #tpu.memory_space<vmem>>, %arg10: memref<8x128xf32, #tpu.memory_space<vmem>>) attributes {dimension_semantics = [#tpu.dimension_semantics<parallel>], iteration_bounds = array<i64: 1>, scalar_prefetch = 0 : i64, scratch_operands = 0 : i64, tpu.core_type = #tpu.core_type<tc>, window_params = [{transform_indices = @transform_0, window_bounds = array<i64: 8, 16>}, {pipeline_mode = #tpu.pipeline_mode<synchronous>, transform_indices = @transform_1, window_bounds = array<i64: 16, 128>}, {pipeline_mode = #tpu.pipeline_mode<synchronous>, transform_indices = @transform_2, window_bounds = array<i64: 1, 128>}, {pipeline_mode = #tpu.pipeline_mode<synchronous>, transform_indices = @transform_3, window_bounds = array<i64: 128, 128>}, {pipeline_mode = #tpu.pipeline_mode<synchronous>, transform_indices = @transform_4, window_bounds = array<i64: 1, 128>}, {pipeline_mode = #tpu.pipeline_mode<synchronous>, transform_indices = @transform_5, window_bounds = array<i64: 128, 128>}, {pipeline_mode = #tpu.pipeline_mode<synchronous>, transform_indices = @transform_6, window_bounds = array<i64: 1, 128>}, {pipeline_mode = #tpu.pipeline_mode<synchronous>, transform_indices = @transform_7, window_bounds = array<i64: 128, 128>}, {pipeline_mode = #tpu.pipeline_mode<synchronous>, transform_indices = @transform_8, window_bounds = array<i64: 1, 128>}, {transform_indices = @transform_9, window_bounds = array<i64: 8, 128>}]} {
    %c0 = arith.constant 0 : index
    %c0_0 = arith.constant 0 : index
    %0 = vector.load %arg1[%c0, %c0_0] : memref<8x16xf32, #tpu.memory_space<vmem>>, vector<8x16xf32>
    %c0_1 = arith.constant 0 : index
    %c0_2 = arith.constant 0 : index
    %1 = vector.load %arg2[%c0_1, %c0_2] : memref<16x128xf32, #tpu.memory_space<vmem>>, vector<16x128xf32>
    %cst = arith.constant dense<0.000000e+00> : vector<8x128xf32>
    %2 = tpu.matmul %0, %1, %cst {dimension_numbers = #tpu.dot_dimension_numbers<[1], [0], [0], [1], [0, 0, 1, 1], [], []>} : vector<8x16xf32>, vector<16x128xf32>, vector<8x128xf32> -> vector<8x128xf32>
    %c0_3 = arith.constant 0 : index
    %c0_4 = arith.constant 0 : index
    %3 = vector.load %arg3[%c0_3, %c0_4] : memref<1x128xf32, #tpu.memory_space<vmem>>, vector<1x128xf32>
    %4 = vector.broadcast %3 : vector<1x128xf32> to vector<8x128xf32>
    %5 = arith.addf %2, %4 : vector<8x128xf32>
    %cst_5 = arith.constant 0.000000e+00 : f32
    %6 = vector.broadcast %cst_5 : f32 to vector<8x128xf32>
    %7 = arith.cmpf ogt, %5, %6 : vector<8x128xf32>
    %cst_6 = arith.constant 0.00999999977 : f32
    %8 = vector.broadcast %cst_6 : f32 to vector<8x128xf32>
    %9 = arith.mulf %8, %5 : vector<8x128xf32>
    %10 = arith.select %7, %5, %9 : vector<8x128xi1>, vector<8x128xf32>
    %c0_7 = arith.constant 0 : index
    %c0_8 = arith.constant 0 : index
    %11 = vector.load %arg4[%c0_7, %c0_8] : memref<128x128xf32, #tpu.memory_space<vmem>>, vector<128x128xf32>
    %cst_9 = arith.constant dense<0.000000e+00> : vector<8x128xf32>
    %12 = tpu.matmul %10, %11, %cst_9 {dimension_numbers = #tpu.dot_dimension_numbers<[1], [0], [0], [1], [0, 0, 1, 1], [], []>} : vector<8x128xf32>, vector<128x128xf32>, vector<8x128xf32> -> vector<8x128xf32>
    %c0_10 = arith.constant 0 : index
    %c0_11 = arith.constant 0 : index
    %13 = vector.load %arg5[%c0_10, %c0_11] : memref<1x128xf32, #tpu.memory_space<vmem>>, vector<1x128xf32>
    %14 = vector.broadcast %13 : vector<1x128xf32> to vector<8x128xf32>
    %15 = arith.addf %12, %14 : vector<8x128xf32>
    %cst_12 = arith.constant 0.000000e+00 : f32
    %16 = vector.broadcast %cst_12 : f32 to vector<8x128xf32>
    %17 = arith.cmpf ogt, %15, %16 : vector<8x128xf32>
    %cst_13 = arith.constant 0.00999999977 : f32
    %18 = vector.broadcast %cst_13 : f32 to vector<8x128xf32>
    %19 = arith.mulf %18, %15 : vector<8x128xf32>
    %20 = arith.select %17, %15, %19 : vector<8x128xi1>, vector<8x128xf32>
    %c0_14 = arith.constant 0 : index
    %c0_15 = arith.constant 0 : index
    %21 = vector.load %arg6[%c0_14, %c0_15] : memref<128x128xf32, #tpu.memory_space<vmem>>, vector<128x128xf32>
    %cst_16 = arith.constant dense<0.000000e+00> : vector<8x128xf32>
    %22 = tpu.matmul %20, %21, %cst_16 {dimension_numbers = #tpu.dot_dimension_numbers<[1], [0], [0], [1], [0, 0, 1, 1], [], []>} : vector<8x128xf32>, vector<128x128xf32>, vector<8x128xf32> -> vector<8x128xf32>
    %c0_17 = arith.constant 0 : index
    %c0_18 = arith.constant 0 : index
    %23 = vector.load %arg7[%c0_17, %c0_18] : memref<1x128xf32, #tpu.memory_space<vmem>>, vector<1x128xf32>
    %24 = vector.broadcast %23 : vector<1x128xf32> to vector<8x128xf32>
    %25 = arith.addf %22, %24 : vector<8x128xf32>
    %cst_19 = arith.constant 0.000000e+00 : f32
    %26 = vector.broadcast %cst_19 : f32 to vector<8x128xf32>
    %27 = arith.cmpf ogt, %25, %26 : vector<8x128xf32>
    %cst_20 = arith.constant 0.00999999977 : f32
    %28 = vector.broadcast %cst_20 : f32 to vector<8x128xf32>
    %29 = arith.mulf %28, %25 : vector<8x128xf32>
    %30 = arith.select %27, %25, %29 : vector<8x128xi1>, vector<8x128xf32>
    %c0_21 = arith.constant 0 : index
    %c0_22 = arith.constant 0 : index
    %31 = vector.load %arg8[%c0_21, %c0_22] : memref<128x128xf32, #tpu.memory_space<vmem>>, vector<128x128xf32>
    %cst_23 = arith.constant dense<0.000000e+00> : vector<8x128xf32>
    %32 = tpu.matmul %30, %31, %cst_23 {dimension_numbers = #tpu.dot_dimension_numbers<[1], [0], [0], [1], [0, 0, 1, 1], [], []>} : vector<8x128xf32>, vector<128x128xf32>, vector<8x128xf32> -> vector<8x128xf32>
    %c0_24 = arith.constant 0 : index
    %c0_25 = arith.constant 0 : index
    %33 = vector.load %arg9[%c0_24, %c0_25] : memref<1x128xf32, #tpu.memory_space<vmem>>, vector<1x128xf32>
    %34 = vector.broadcast %33 : vector<1x128xf32> to vector<8x128xf32>
    %35 = arith.addf %32, %34 : vector<8x128xf32>
    %c0_26 = arith.constant 0 : index
    %c0_27 = arith.constant 0 : index
    %36 = vector.load %arg10[%c0_26, %c0_27] : memref<8x128xf32, #tpu.memory_space<vmem>>, vector<8x128xf32>
    tpu.vector_store %arg10[%c0_26, %c0_27], %35 {strides = array<i32>} : memref<8x128xf32, #tpu.memory_space<vmem>>, vector<8x128xf32>,
    return
  }
  func.func @transform_0(%arg0: i32) -> (i32, i32) {
    %c0_i32 = arith.constant 0 : i32
    %c0_i32_0 = arith.constant 0 : i32
    return %arg0, %c0_i32 : i32, i32
  }
  func.func @transform_1(%arg0: i32) -> (i32, i32) {
    %c0_i32 = arith.constant 0 : i32
    %c0_i32_0 = arith.constant 0 : i32
    %c0_i32_1 = arith.constant 0 : i32
    return %c0_i32, %c0_i32_0 : i32, i32
  }
  func.func @transform_2(%arg0: i32) -> (i32, i32) {
    %c0_i32 = arith.constant 0 : i32
    %c0_i32_0 = arith.constant 0 : i32
    %c0_i32_1 = arith.constant 0 : i32
    return %c0_i32, %c0_i32_0 : i32, i32
  }
  func.func @transform_3(%arg0: i32) -> (i32, i32) {
    %c0_i32 = arith.constant 0 : i32
    %c0_i32_0 = arith.constant 0 : i32
    %c0_i32_1 = arith.constant 0 : i32
    return %c0_i32, %c0_i32_0 : i32, i32
  }
  func.func @transform_4(%arg0: i32) -> (i32, i32) {
    %c0_i32 = arith.constant 0 : i32
    %c0_i32_0 = arith.constant 0 : i32
    %c0_i32_1 = arith.constant 0 : i32
    return %c0_i32, %c0_i32_0 : i32, i32
  }
  func.func @transform_5(%arg0: i32) -> (i32, i32) {
    %c0_i32 = arith.constant 0 : i32
    %c0_i32_0 = arith.constant 0 : i32
    %c0_i32_1 = arith.constant 0 : i32
    return %c0_i32, %c0_i32_0 : i32, i32
  }
  func.func @transform_6(%arg0: i32) -> (i32, i32) {
    %c0_i32 = arith.constant 0 : i32
    %c0_i32_0 = arith.constant 0 : i32
    %c0_i32_1 = arith.constant 0 : i32
    return %c0_i32, %c0_i32_0 : i32, i32
  }
  func.func @transform_7(%arg0: i32) -> (i32, i32) {
    %c0_i32 = arith.constant 0 : i32
    %c0_i32_0 = arith.constant 0 : i32
    %c0_i32_1 = arith.constant 0 : i32
    return %c0_i32, %c0_i32_0 : i32, i32
  }
  func.func @transform_8(%arg0: i32) -> (i32, i32) {
    %c0_i32 = arith.constant 0 : i32
    %c0_i32_0 = arith.constant 0 : i32
    %c0_i32_1 = arith.constant 0 : i32
    return %c0_i32, %c0_i32_0 : i32, i32
  }
  func.func @transform_9(%arg0: i32) -> (i32, i32) {
    %c0_i32 = arith.constant 0 : i32
    %c0_i32_0 = arith.constant 0 : i32
    return %arg0, %c0_i32 : i32, i32
  }
}

</mosaic_0001>

<llo_original>
// kernel: dqn_forward.1
$region0: #{dqn_forward.1}
  #allocation0 [shape = 'u32[]', space=smem, size = 0x4, offset = 0x4, fixed_abs, tag = 'smem constant byte address 0x4 - core index']
  #allocation1 [shape = 'u32[144,128]{1,0:T(1,128)}', space=vmem, size = 0x12000, scoped, tag = 'internal scratch']
  %s0 = inlined_call_operand.hbm [shape: f32[8,16], index: 0, kind: input, shape index: {}]
  %s1 = inlined_call_operand.hbm [shape: f32[16,128], index: 1, kind: input, shape index: {}]
  %s2 = inlined_call_operand.vmem [shape: f32[1,128], index: 2, kind: input, shape index: {}]
  %s3 = inlined_call_operand.hbm [shape: f32[128,128], index: 3, kind: input, shape index: {}]
  %s4 = inlined_call_operand.vmem [shape: f32[1,128], index: 4, kind: input, shape index: {}]
  %s5 = inlined_call_operand.hbm [shape: f32[128,128], index: 5, kind: input, shape index: {}]
  %s6 = inlined_call_operand.vmem [shape: f32[1,128], index: 6, kind: input, shape index: {}]
  %s7 = inlined_call_operand.hbm [shape: f32[128,128], index: 7, kind: input, shape index: {}]
  %s8 = inlined_call_operand.vmem [shape: f32[1,128], index: 8, kind: input, shape index: {}]
  %s9 = inlined_call_operand.vmem [shape: f32[8,128], index: 9, kind: output, shape index: {}]
  %s10 = sld [smem:[#allocation0]]
  $region66: #{dqn_forward.1} parent=0
    _
  %s12 = ssub.s32 1, %s10
  %s13 = scalar_select 0, %s12, %s10
  $region1: #{dqn_forward.1} parent=0
    #allocation2 [shape = 'u8[4096]{0}', space=vmem, size = 0x1000, scoped, tag = 'input window, operand 0, single buffered']
    #allocation3 [shape = 's32[1]{0}', space=sflag, size = 0x4, scoped, tag = 'scoped memory for dqn_forward.1']
    #allocation4 [shape = 'u8[8192]{0}', space=vmem, size = 0x2000, scoped, tag = 'input window, operand 1, single buffered']
    #allocation5 [shape = 's32[1]{0}', space=sflag, size = 0x4, scoped, tag = 'scoped memory for dqn_forward.1']
    #allocation6 [shape = 'u8[65536]{0}', space=vmem, size = 0x10000, scoped, tag = 'input window, operand 3, single buffered']
    #allocation7 [shape = 'u8[65536]{0}', space=vmem, size = 0x10000, scoped, tag = 'input window, operand 5, single buffered']
    #allocation8 [shape = 's32[1]{0}', space=sflag, size = 0x4, scoped, tag = 'scoped memory for dqn_forward.1']
    #allocation9 [shape = 'u8[65536]{0}', space=vmem, size = 0x10000, scoped, tag = 'input window, operand 7, single buffered']
    %14 = vsyncpa [#allocation3], 0
    %15 = vsyncpa [#allocation5], 0
    %16 = vsyncpa [#allocation8], 0
    // Predicated region
    $region2: #{dqn_forward.1} parent=1 // pred_check
      _
    $region3: #{dqn_forward.1} parent=1 // pred_check_branch
      %18 = sbr.rel (0) target = $region5
    $region4: #{dqn_forward.1} parent=1 // pred_region
      %s20 = ssub.s32 128, 128
      %21 = vsyncadd [#allocation3], %s20
      %s23 = sshll.u32 [#allocation2], 4
      %s24 = int_to_ptr.vmem [resolvable:$true] %s23
      %26 = dma.hbm_to_vmem [thread:$0]  %s0, 128, %s24, [#allocation3]
    $region5: #{dqn_forward.1} parent=1 // pred_fallthru
      _
    // Predicated region
    $region6: #{dqn_forward.1} parent=1 // pred_check
      _
    $region7: #{dqn_forward.1} parent=1 // pred_check_branch
      %28 = sbr.rel (0) target = $region9
    $region8: #{dqn_forward.1} parent=1 // pred_region
      %s30 = ssub.s32 256, 256
      %31 = vsyncadd [#allocation5], %s30
      %s32 = sshll.u32 [#allocation4], 4
      %s33 = int_to_ptr.vmem [resolvable:$true] %s32
      %38 = dma.hbm_to_vmem [thread:$0]  %s1, 256, %s33, [#allocation5], 128, 128, 8
    $region9: #{dqn_forward.1} parent=1 // pred_fallthru
      _
    // Predicated region
    $region10: #{dqn_forward.1} parent=1 // pred_check
      _
    $region11: #{dqn_forward.1} parent=1 // pred_check_branch
      %40 = sbr.rel (0) target = $region13
    $region12: #{dqn_forward.1} parent=1 // pred_region
      _
    $region13: #{dqn_forward.1} parent=1 // pred_fallthru
      _
    // Predicated region
    $region14: #{dqn_forward.1} parent=1 // pred_check
      _
    $region15: #{dqn_forward.1} parent=1 // pred_check_branch
      %42 = sbr.rel (0) target = $region17
    $region16: #{dqn_forward.1} parent=1 // pred_region
      %s44 = ssub.s32 2048, 2048
      %45 = vsyncadd [#allocation5], %s44
      %s46 = sshll.u32 [#allocation6], 4
      %s47 = int_to_ptr.vmem [resolvable:$true] %s46
      %52 = dma.hbm_to_vmem [thread:$0]  %s3, 2048, %s47, [#allocation5], 128, 128, 8
    $region17: #{dqn_forward.1} parent=1 // pred_fallthru
      _
    // Predicated region
    $region18: #{dqn_forward.1} parent=1 // pred_check
      _
    $region19: #{dqn_forward.1} parent=1 // pred_check_branch
      %54 = sbr.rel (0) target = $region21
    $region20: #{dqn_forward.1} parent=1 // pred_region
      _
    $region21: #{dqn_forward.1} parent=1 // pred_fallthru
      _
    // Predicated region
    $region22: #{dqn_forward.1} parent=1 // pred_check
      _
    $region23: #{dqn_forward.1} parent=1 // pred_check_branch
      %56 = sbr.rel (0) target = $region25
    $region24: #{dqn_forward.1} parent=1 // pred_region
      %s58 = ssub.s32 2048, 2048
      %59 = vsyncadd [#allocation8], %s58
      %s60 = sshll.u32 [#allocation7], 4
      %s61 = int_to_ptr.vmem [resolvable:$true] %s60
      %66 = dma.hbm_to_vmem [thread:$0]  %s5, 2048, %s61, [#allocation8], 128, 128, 8
    $region25: #{dqn_forward.1} parent=1 // pred_fallthru
      _
    // Predicated region
    $region26: #{dqn_forward.1} parent=1 // pred_check
      _
    $region27: #{dqn_forward.1} parent=1 // pred_check_branch
      %68 = sbr.rel (0) target = $region29
    $region28: #{dqn_forward.1} parent=1 // pred_region
      _
    $region29: #{dqn_forward.1} parent=1 // pred_fallthru
      _
    // Predicated region
    $region30: #{dqn_forward.1} parent=1 // pred_check
      _
    $region31: #{dqn_forward.1} parent=1 // pred_check_branch
      %70 = sbr.rel (0) target = $region33
    $region32: #{dqn_forward.1} parent=1 // pred_region
      %s72 = ssub.s32 2048, 2048
      %73 = vsyncadd [#allocation8], %s72
      %s74 = sshll.u32 [#allocation9], 4
      %s75 = int_to_ptr.vmem [resolvable:$true] %s74
      %80 = dma.hbm_to_vmem [thread:$0]  %s7, 2048, %s75, [#allocation8], 128, 128, 8
    $region33: #{dqn_forward.1} parent=1 // pred_fallthru
      _
    // Predicated region
    $region34: #{dqn_forward.1} parent=1 // pred_check
      _
    $region35: #{dqn_forward.1} parent=1 // pred_check_branch
      %82 = sbr.rel (0) target = $region37
    $region36: #{dqn_forward.1} parent=1 // pred_region
      _
    $region37: #{dqn_forward.1} parent=1 // pred_fallthru
      _
    // Predicated region
    $region38: #{dqn_forward.1} parent=1 // pred_check
      _
    $region39: #{dqn_forward.1} parent=1 // pred_check_branch
      %84 = sbr.rel (0) target = $region41
    $region40: #{dqn_forward.1} parent=1 // pred_region
      %85 = dma.done [#allocation3], 128
    $region41: #{dqn_forward.1} parent=1 // pred_fallthru
      _
    // Predicated region
    $region42: #{dqn_forward.1} parent=1 // pred_check
      _
    $region43: #{dqn_forward.1} parent=1 // pred_check_branch
      %87 = sbr.rel (0) target = $region45
    $region44: #{dqn_forward.1} parent=1 // pred_region
      %88 = dma.done [#allocation5], 256
    $region45: #{dqn_forward.1} parent=1 // pred_fallthru
      _
    // Predicated region
    $region46: #{dqn_forward.1} parent=1 // pred_check
      _
    $region47: #{dqn_forward.1} parent=1 // pred_check_branch
      %90 = sbr.rel (0) target = $region49
    $region48: #{dqn_forward.1} parent=1 // pred_region
      %91 = dma.done [#allocation5], 2048
    $region49: #{dqn_forward.1} parent=1 // pred_fallthru
      _
    // Predicated region
    $region50: #{dqn_forward.1} parent=1 // pred_check
      _
    $region51: #{dqn_forward.1} parent=1 // pred_check_branch
      %93 = sbr.rel (0) target = $region53
    $region52: #{dqn_forward.1} parent=1 // pred_region
      %94 = dma.done [#allocation8], 2048
    $region53: #{dqn_forward.1} parent=1 // pred_fallthru
      _
    // Predicated region
    $region54: #{dqn_forward.1} parent=1 // pred_check
      _
    $region55: #{dqn_forward.1} parent=1 // pred_check_branch
      %96 = sbr.rel (0) target = $region57
    $region56: #{dqn_forward.1} parent=1 // pred_region
      %97 = dma.done [#allocation8], 2048
    $region57: #{dqn_forward.1} parent=1 // pred_fallthru
      _
    %v98 = vld [vmem:[#allocation2] sm:$0xff]
    %v99 = vld [vmem:[#allocation4] sm:$0xff]
    %v100 = vld [vmem:[#allocation4 + $0x8] sm:$0xff]
    %v101 = vld [vmem:[%s2] sm:$0x1]
    %v103 = vlaneseq
    %v104 = vshrl.u32 %v103, 7
    %v105 = vsub.s32 0, %v104
    %v106 = vrot.slane %v101, %v105
    %vm108 = vcmask 130048
    %v110 = vsel %vm108, %v98, 0
    %112 = vmatprep.subr.mxu0 0.0
    %113 = vmatpush1.msra.mxu0 %v99
    %114 = vmatprep.subr.mxu0 0.0
    %115 = vmatpush1.msra.mxu0 %v100
    %116 = vmatprep.subr.mxu0 0.0
    %117 = vmatpush1.msra.mxu0 0.0
    %118 = vmatprep.subr.mxu0 0.0
    %119 = vmatpush1.msra.mxu0 0.0
    %120 = vmatprep.subr.mxu0 0.0
    %121 = vmatpush1.msra.mxu0 0.0
    %122 = vmatprep.subr.mxu0 0.0
    %123 = vmatpush1.msra.mxu0 0.0
    %124 = vmatprep.subr.mxu0 0.0
    %125 = vmatpush1.msra.mxu0 0.0
    %126 = vmatprep.subr.mxu0 0.0
    %127 = vmatpush1.msra.mxu0 0.0
    %128 = vmatprep.subr.mxu0 0.0
    %129 = vmatpush1.msra.mxu0 0.0
    %130 = vmatprep.subr.mxu0 0.0
    %131 = vmatpush1.msra.mxu0 0.0
    %132 = vmatprep.subr.mxu0 0.0
    %133 = vmatpush1.msra.mxu0 0.0
    %134 = vmatprep.subr.mxu0 0.0
    %135 = vmatpush1.msra.mxu0 0.0
    %136 = vmatprep.subr.mxu0 0.0
    %137 = vmatpush1.msra.mxu0 0.0
    %138 = vmatprep.subr.mxu0 0.0
    %139 = vmatpush1.msra.mxu0 0.0
    %140 = vmatprep.subr.mxu0 0.0
    %141 = vmatpush1.msra.mxu0 0.0
    %142 = vmatprep.subr.mxu0 0.0
    %143 = vmatpush1.msra.mxu0 0.0
    %144 = vmatprep.subr.mxu0 0.0
    %145 = vmatpush1.msra.mxu0 0.0
    %146 = vmatprep.subr.mxu0 0.0
    %147 = vmatpush1.msra.mxu0 0.0
    %148 = vmatprep.subr.mxu0 0.0
    %149 = vmatpush1.msra.mxu0 0.0
    %150 = vmatprep.subr.mxu0 0.0
    %151 = vmatpush1.msra.mxu0 0.0
    %152 = vmatprep.subr.mxu0 0.0
    %153 = vmatpush1.msra.mxu0 0.0
    %154 = vmatprep.subr.mxu0 0.0
    %155 = vmatpush1.msra.mxu0 0.0
    %156 = vmatprep.subr.mxu0 0.0
    %157 = vmatpush1.msra.mxu0 0.0
    %158 = vmatprep.subr.mxu0 0.0
    %159 = vmatpush1.msra.mxu0 0.0
    %160 = vmatprep.subr.mxu0 0.0
    %161 = vmatpush1.msra.mxu0 0.0
    %162 = vmatprep.subr.mxu0 0.0
    %163 = vmatpush1.msra.mxu0 0.0
    %164 = vmatprep.subr.mxu0 0.0
    %165 = vmatpush1.msra.mxu0 0.0
    %166 = vmatprep.subr.mxu0 0.0
    %167 = vmatpush1.msra.mxu0 0.0
    %168 = vmatprep.subr.mxu0 0.0
    %169 = vmatpush1.msra.mxu0 0.0
    %170 = vmatprep.subr.mxu0 0.0
    %171 = vmatpush1.msra.mxu0 0.0
    %172 = vmatprep.subr.mxu0 0.0
    %173 = vmatpush1.msra.mxu0 0.0
    %174 = vmatprep.subr.mxu0 0.0
    %175 = vmatpush1.msra.mxu0 0.0
    %176 = vmatprep.mubr.f32.mxu0 0.0
    %177 = vmatmul.mubr.f32.gmra.mrb[0].mxu0 %v110
    %v178 = vpop.f32.mrb[0].mxu0
    %v179 = vadd.f32 %v106, %v178
    %v180 = vpop.f32.mrb[0].mxu0
    %181 = vdwg.mxu0
    %vm182 = vcmp.gt.f32.partialorder %v179, 0.0
    %v183 = vmul.f32 %v179, 0.01
    %v184 = vsel %vm182, %v179, %v183
    %v185 = vld [vmem:[#allocation6] sm:$0xff]
    %v186 = vld [vmem:[#allocation6 + $0x8] sm:$0xff]
    %v187 = vld [vmem:[#allocation6 + $0x10] sm:$0xff]
    %v188 = vld [vmem:[#allocation6 + $0x18] sm:$0xff]
    %v189 = vld [vmem:[#allocation6 + $0x20] sm:$0xff]
    %v190 = vld [vmem:[#allocation6 + $0x28] sm:$0xff]
    %v191 = vld [vmem:[#allocation6 + $0x30] sm:$0xff]
    %v192 = vld [vmem:[#allocation6 + $0x38] sm:$0xff]
    %v193 = vld [vmem:[#allocation6 + $0x40] sm:$0xff]
    %v194 = vld [vmem:[#allocation6 + $0x48] sm:$0xff]
    %v195 = vld [vmem:[#allocation6 + $0x50] sm:$0xff]
    %v196 = vld [vmem:[#allocation6 + $0x58] sm:$0xff]
    %v197 = vld [vmem:[#allocation6 + $0x60] sm:$0xff]
    %v198 = vld [vmem:[#allocation6 + $0x68] sm:$0xff]
    %v199 = vld [vmem:[#allocation6 + $0x70] sm:$0xff]
    %v200 = vld [vmem:[#allocation6 + $0x78] sm:$0xff]
    %v201 = vld [vmem:[%s4] sm:$0x1]
    %v203 = vlaneseq
    %v204 = vshrl.u32 %v203, 7
    %v205 = vsub.s32 0, %v204
    %v206 = vrot.slane %v201, %v205
    %208 = vmatprep.subr.mxu0 0.0
    %209 = vmatpush1.msra.mxu0 %v185
    %210 = vmatprep.subr.mxu0 0.0
    %211 = vmatpush1.msra.mxu0 %v186
    %212 = vmatprep.subr.mxu0 0.0
    %213 = vmatpush1.msra.mxu0 %v187
    %214 = vmatprep.subr.mxu0 0.0
    %215 = vmatpush1.msra.mxu0 %v188
    %216 = vmatprep.subr.mxu0 0.0
    %217 = vmatpush1.msra.mxu0 %v189
    %218 = vmatprep.subr.mxu0 0.0
    %219 = vmatpush1.msra.mxu0 %v190
    %220 = vmatprep.subr.mxu0 0.0
    %221 = vmatpush1.msra.mxu0 %v191
    %222 = vmatprep.subr.mxu0 0.0
    %223 = vmatpush1.msra.mxu0 %v192
    %224 = vmatprep.subr.mxu0 0.0
    %225 = vmatpush1.msra.mxu0 %v193
    %226 = vmatprep.subr.mxu0 0.0
    %227 = vmatpush1.msra.mxu0 %v194
    %228 = vmatprep.subr.mxu0 0.0
    %229 = vmatpush1.msra.mxu0 %v195
    %230 = vmatprep.subr.mxu0 0.0
    %231 = vmatpush1.msra.mxu0 %v196
    %232 = vmatprep.subr.mxu0 0.0
    %233 = vmatpush1.msra.mxu0 %v197
    %234 = vmatprep.subr.mxu0 0.0
    %235 = vmatpush1.msra.mxu0 %v198
    %236 = vmatprep.subr.mxu0 0.0
    %237 = vmatpush1.msra.mxu0 %v199
    %238 = vmatprep.subr.mxu0 0.0
    %239 = vmatpush1.msra.mxu0 %v200
    %240 = vmatprep.subr.mxu0 0.0
    %241 = vmatpush1.msra.mxu0 0.0
    %242 = vmatprep.subr.mxu0 0.0
    %243 = vmatpush1.msra.mxu0 0.0
    %244 = vmatprep.subr.mxu0 0.0
    %245 = vmatpush1.msra.mxu0 0.0
    %246 = vmatprep.subr.mxu0 0.0
    %247 = vmatpush1.msra.mxu0 0.0
    %248 = vmatprep.subr.mxu0 0.0
    %249 = vmatpush1.msra.mxu0 0.0
    %250 = vmatprep.subr.mxu0 0.0
    %251 = vmatpush1.msra.mxu0 0.0
    %252 = vmatprep.subr.mxu0 0.0
    %253 = vmatpush1.msra.mxu0 0.0
    %254 = vmatprep.subr.mxu0 0.0
    %255 = vmatpush1.msra.mxu0 0.0
    %256 = vmatprep.subr.mxu0 0.0
    %257 = vmatpush1.msra.mxu0 0.0
    %258 = vmatprep.subr.mxu0 0.0
    %259 = vmatpush1.msra.mxu0 0.0
    %260 = vmatprep.subr.mxu0 0.0
    %261 = vmatpush1.msra.mxu0 0.0
    %262 = vmatprep.subr.mxu0 0.0
    %263 = vmatpush1.msra.mxu0 0.0
    %264 = vmatprep.subr.mxu0 0.0
    %265 = vmatpush1.msra.mxu0 0.0
    %266 = vmatprep.subr.mxu0 0.0
    %267 = vmatpush1.msra.mxu0 0.0
    %268 = vmatprep.subr.mxu0 0.0
    %269 = vmatpush1.msra.mxu0 0.0
    %270 = vmatprep.subr.mxu0 0.0
    %271 = vmatpush1.msra.mxu0 0.0
    %272 = vmatprep.mubr.f32.mxu0 0.0
    %273 = vmatmul.mubr.f32.gmra.mrb[0].mxu0 %v184
    %v274 = vpop.f32.mrb[0].mxu0
    %v275 = vadd.f32 %v206, %v274
    %v276 = vpop.f32.mrb[0].mxu0
    %277 = vdwg.mxu0
    %vm278 = vcmp.gt.f32.partialorder %v275, 0.0
    %v279 = vmul.f32 %v275, 0.01
    %v280 = vsel %vm278, %v275, %v279
    %v281 = vld [vmem:[#allocation7] sm:$0xff]
    %v282 = vld [vmem:[#allocation7 + $0x8] sm:$0xff]
    %v283 = vld [vmem:[#allocation7 + $0x10] sm:$0xff]
    %v284 = vld [vmem:[#allocation7 + $0x18] sm:$0xff]
    %v285 = vld [vmem:[#allocation7 + $0x20] sm:$0xff]
    %v286 = vld [vmem:[#allocation7 + $0x28] sm:$0xff]
    %v287 = vld [vmem:[#allocation7 + $0x30] sm:$0xff]
    %v288 = vld [vmem:[#allocation7 + $0x38] sm:$0xff]
    %v289 = vld [vmem:[#allocation7 + $0x40] sm:$0xff]
    %v290 = vld [vmem:[#allocation7 + $0x48] sm:$0xff]
    %v291 = vld [vmem:[#allocation7 + $0x50] sm:$0xff]
    %v292 = vld [vmem:[#allocation7 + $0x58] sm:$0xff]
    %v293 = vld [vmem:[#allocation7 + $0x60] sm:$0xff]
    %v294 = vld [vmem:[#allocation7 + $0x68] sm:$0xff]
    %v295 = vld [vmem:[#allocation7 + $0x70] sm:$0xff]
    %v296 = vld [vmem:[#allocation7 + $0x78] sm:$0xff]
    %v297 = vld [vmem:[%s6] sm:$0x1]
    %v299 = vlaneseq
    %v300 = vshrl.u32 %v299, 7
    %v301 = vsub.s32 0, %v300
    %v302 = vrot.slane %v297, %v301
    %304 = vmatprep.subr.mxu0 0.0
    %305 = vmatpush1.msra.mxu0 %v281
    %306 = vmatprep.subr.mxu0 0.0
    %307 = vmatpush1.msra.mxu0 %v282
    %308 = vmatprep.subr.mxu0 0.0
    %309 = vmatpush1.msra.mxu0 %v283
    %310 = vmatprep.subr.mxu0 0.0
    %311 = vmatpush1.msra.mxu0 %v284
    %312 = vmatprep.subr.mxu0 0.0
    %313 = vmatpush1.msra.mxu0 %v285
    %314 = vmatprep.subr.mxu0 0.0
    %315 = vmatpush1.msra.mxu0 %v286
    %316 = vmatprep.subr.mxu0 0.0
    %317 = vmatpush1.msra.mxu0 %v287
    %318 = vmatprep.subr.mxu0 0.0
    %319 = vmatpush1.msra.mxu0 %v288
    %320 = vmatprep.subr.mxu0 0.0
    %321 = vmatpush1.msra.mxu0 %v289
    %322 = vmatprep.subr.mxu0 0.0
    %323 = vmatpush1.msra.mxu0 %v290
    %324 = vmatprep.subr.mxu0 0.0
    %325 = vmatpush1.msra.mxu0 %v291
    %326 = vmatprep.subr.mxu0 0.0
    %327 = vmatpush1.msra.mxu0 %v292
    %328 = vmatprep.subr.mxu0 0.0
    %329 = vmatpush1.msra.mxu0 %v293
    %330 = vmatprep.subr.mxu0 0.0
    %331 = vmatpush1.msra.mxu0 %v294
    %332 = vmatprep.subr.mxu0 0.0
    %333 = vmatpush1.msra.mxu0 %v295
    %334 = vmatprep.subr.mxu0 0.0
    %335 = vmatpush1.msra.mxu0 %v296
    %336 = vmatprep.subr.mxu0 0.0
    %337 = vmatpush1.msra.mxu0 0.0
    %338 = vmatprep.subr.mxu0 0.0
    %339 = vmatpush1.msra.mxu0 0.0
    %340 = vmatprep.subr.mxu0 0.0
    %341 = vmatpush1.msra.mxu0 0.0
    %342 = vmatprep.subr.mxu0 0.0
    %343 = vmatpush1.msra.mxu0 0.0
    %344 = vmatprep.subr.mxu0 0.0
    %345 = vmatpush1.msra.mxu0 0.0
    %346 = vmatprep.subr.mxu0 0.0
    %347 = vmatpush1.msra.mxu0 0.0
    %348 = vmatprep.subr.mxu0 0.0
    %349 = vmatpush1.msra.mxu0 0.0
    %350 = vmatprep.subr.mxu0 0.0
    %351 = vmatpush1.msra.mxu0 0.0
    %352 = vmatprep.subr.mxu0 0.0
    %353 = vmatpush1.msra.mxu0 0.0
    %354 = vmatprep.subr.mxu0 0.0
    %355 = vmatpush1.msra.mxu0 0.0
    %356 = vmatprep.subr.mxu0 0.0
    %357 = vmatpush1.msra.mxu0 0.0
    %358 = vmatprep.subr.mxu0 0.0
    %359 = vmatpush1.msra.mxu0 0.0
    %360 = vmatprep.subr.mxu0 0.0
    %361 = vmatpush1.msra.mxu0 0.0
    %362 = vmatprep.subr.mxu0 0.0
    %363 = vmatpush1.msra.mxu0 0.0
    %364 = vmatprep.subr.mxu0 0.0
    %365 = vmatpush1.msra.mxu0 0.0
    %366 = vmatprep.subr.mxu0 0.0
    %367 = vmatpush1.msra.mxu0 0.0
    %368 = vmatprep.mubr.f32.mxu0 0.0
    %369 = vmatmul.mubr.f32.gmra.mrb[0].mxu0 %v280
    %v370 = vpop.f32.mrb[0].mxu0
    %v371 = vadd.f32 %v302, %v370
    %v372 = vpop.f32.mrb[0].mxu0
    %373 = vdwg.mxu0
    %vm374 = vcmp.gt.f32.partialorder %v371, 0.0
    %v375 = vmul.f32 %v371, 0.01
    %v376 = vsel %vm374, %v371, %v375
    %v377 = vld [vmem:[#allocation9] sm:$0xff]
    %v378 = vld [vmem:[#allocation9 + $0x8] sm:$0xff]
    %v379 = vld [vmem:[#allocation9 + $0x10] sm:$0xff]
    %v380 = vld [vmem:[#allocation9 + $0x18] sm:$0xff]
    %v381 = vld [vmem:[#allocation9 + $0x20] sm:$0xff]
    %v382 = vld [vmem:[#allocation9 + $0x28] sm:$0xff]
    %v383 = vld [vmem:[#allocation9 + $0x30] sm:$0xff]
    %v384 = vld [vmem:[#allocation9 + $0x38] sm:$0xff]
    %v385 = vld [vmem:[#allocation9 + $0x40] sm:$0xff]
    %v386 = vld [vmem:[#allocation9 + $0x48] sm:$0xff]
    %v387 = vld [vmem:[#allocation9 + $0x50] sm:$0xff]
    %v388 = vld [vmem:[#allocation9 + $0x58] sm:$0xff]
    %v389 = vld [vmem:[#allocation9 + $0x60] sm:$0xff]
    %v390 = vld [vmem:[#allocation9 + $0x68] sm:$0xff]
    %v391 = vld [vmem:[#allocation9 + $0x70] sm:$0xff]
    %v392 = vld [vmem:[#allocation9 + $0x78] sm:$0xff]
    %v393 = vld [vmem:[%s8] sm:$0x1]
    %v395 = vlaneseq
    %v396 = vshrl.u32 %v395, 7
    %v397 = vsub.s32 0, %v396
    %v398 = vrot.slane %v393, %v397
    %400 = vmatprep.subr.mxu0 0.0
    %401 = vmatpush1.msra.mxu0 %v377
    %402 = vmatprep.subr.mxu0 0.0
    %403 = vmatpush1.msra.mxu0 %v378
    %404 = vmatprep.subr.mxu0 0.0
    %405 = vmatpush1.msra.mxu0 %v379
    %406 = vmatprep.subr.mxu0 0.0
    %407 = vmatpush1.msra.mxu0 %v380
    %408 = vmatprep.subr.mxu0 0.0
    %409 = vmatpush1.msra.mxu0 %v381
    %410 = vmatprep.subr.mxu0 0.0
    %411 = vmatpush1.msra.mxu0 %v382
    %412 = vmatprep.subr.mxu0 0.0
    %413 = vmatpush1.msra.mxu0 %v383
    %414 = vmatprep.subr.mxu0 0.0
    %415 = vmatpush1.msra.mxu0 %v384
    %416 = vmatprep.subr.mxu0 0.0
    %417 = vmatpush1.msra.mxu0 %v385
    %418 = vmatprep.subr.mxu0 0.0
    %419 = vmatpush1.msra.mxu0 %v386
    %420 = vmatprep.subr.mxu0 0.0
    %421 = vmatpush1.msra.mxu0 %v387
    %422 = vmatprep.subr.mxu0 0.0
    %423 = vmatpush1.msra.mxu0 %v388
    %424 = vmatprep.subr.mxu0 0.0
    %425 = vmatpush1.msra.mxu0 %v389
    %426 = vmatprep.subr.mxu0 0.0
    %427 = vmatpush1.msra.mxu0 %v390
    %428 = vmatprep.subr.mxu0 0.0
    %429 = vmatpush1.msra.mxu0 %v391
    %430 = vmatprep.subr.mxu0 0.0
    %431 = vmatpush1.msra.mxu0 %v392
    %432 = vmatprep.subr.mxu0 0.0
    %433 = vmatpush1.msra.mxu0 0.0
    %434 = vmatprep.subr.mxu0 0.0
    %435 = vmatpush1.msra.mxu0 0.0
    %436 = vmatprep.subr.mxu0 0.0
    %437 = vmatpush1.msra.mxu0 0.0
    %438 = vmatprep.subr.mxu0 0.0
    %439 = vmatpush1.msra.mxu0 0.0
    %440 = vmatprep.subr.mxu0 0.0
    %441 = vmatpush1.msra.mxu0 0.0
    %442 = vmatprep.subr.mxu0 0.0
    %443 = vmatpush1.msra.mxu0 0.0
    %444 = vmatprep.subr.mxu0 0.0
    %445 = vmatpush1.msra.mxu0 0.0
    %446 = vmatprep.subr.mxu0 0.0
    %447 = vmatpush1.msra.mxu0 0.0
    %448 = vmatprep.subr.mxu0 0.0
    %449 = vmatpush1.msra.mxu0 0.0
    %450 = vmatprep.subr.mxu0 0.0
    %451 = vmatpush1.msra.mxu0 0.0
    %452 = vmatprep.subr.mxu0 0.0
    %453 = vmatpush1.msra.mxu0 0.0
    %454 = vmatprep.subr.mxu0 0.0
    %455 = vmatpush1.msra.mxu0 0.0
    %456 = vmatprep.subr.mxu0 0.0
    %457 = vmatpush1.msra.mxu0 0.0
    %458 = vmatprep.subr.mxu0 0.0
    %459 = vmatpush1.msra.mxu0 0.0
    %460 = vmatprep.subr.mxu0 0.0
    %461 = vmatpush1.msra.mxu0 0.0
    %462 = vmatprep.subr.mxu0 0.0
    %463 = vmatpush1.msra.mxu0 0.0
    %464 = vmatprep.mubr.f32.mxu0 0.0
    %465 = vmatmul.mubr.f32.gmra.mrb[0].mxu0 %v376
    %v466 = vpop.f32.mrb[0].mxu0
    %v467 = vadd.f32 %v398, %v466
    %v468 = vpop.f32.mrb[0].mxu0
    %469 = vdwg.mxu0
    %470 = vst [vmem:[%s9] sm:$0xff] %v467
    // Predicated region
    $region58: #{dqn_forward.1} parent=1 // pred_check
      _
    $region59: #{dqn_forward.1} parent=1 // pred_check_branch
      %472 = sbr.rel (0) target = $region61
    $region60: #{dqn_forward.1} parent=1 // pred_region
      _
    $region61: #{dqn_forward.1} parent=1 // pred_fallthru
      _
    // Predicated region
    $region62: #{dqn_forward.1} parent=1 // pred_check
      _
    $region63: #{dqn_forward.1} parent=1 // pred_check_branch
      %474 = sbr.rel (0) target = $region65
    $region64: #{dqn_forward.1} parent=1 // pred_region
      _
    $region65: #{dqn_forward.1} parent=1 // pred_fallthru
      _
    %475 = vsyncpa [#allocation3], 1
    %476 = vsyncpa [#allocation5], 1
    %477 = vsyncpa [#allocation8], 1

</llo_original>
